<compile_context>
chip_gen: v7x
topology: tpu7x:2x2x1
jax: 0.10.0
libtpu: 0.0.40
codegen_flags: <defaults>
</compile_context>

<pallas_src>
import functools

import jax
import jax.numpy as jnp
from jax.experimental import pallas as pl
from jax.experimental.pallas import tpu as pltpu


def _round_up(x, m):
    return ((x + m - 1) // m) * m


def _action_model_kernel(x_ref, w1_ref, b1_ref, w2_ref, b2_ref, out_ref):
    # ---- Linear 1 + tanh ----------------------------------------------------
    # bf16 operands for the MXU, f32 accumulation; bias add + tanh in f32.
    x = x_ref[...].astype(jnp.bfloat16)                      # (TB, n_obs)
    w1 = w1_ref[...].astype(jnp.bfloat16)                    # (n_obs, n_hidden)
    z = jnp.dot(x, w1, preferred_element_type=jnp.float32) + b1_ref[...]
    z = jnp.tanh(z)                                          # (TB, n_hidden) f32

    # ---- Linear 2 (action scores, padded to lane-dense width) ---------------
    w2 = w2_ref[...].astype(jnp.bfloat16)                    # (n_hidden, n_pad)
    scores = jnp.dot(z.astype(jnp.bfloat16), w2,
                     preferred_element_type=jnp.float32) + b2_ref[...]
    # Padded lanes carry bias = -1e30 -> exp underflows to exactly 0.

    # ---- Numerically stable softmax over the last (lane) axis, in f32 -------
    m = jnp.max(scores, axis=-1, keepdims=True)
    e = jnp.exp(scores - m)
    denom = jnp.sum(e, axis=-1, keepdims=True)
    out_ref[...] = e * pl.reciprocal(denom, approx=True)


def action_model_forward(frame, w1, b1, w2, b2, *, block_b=256):
    """frame: (B, n_obs) f32; w1: (n_obs, n_hidden); b1: (1, n_hidden);
    w2: (n_hidden, n_actions); b2: (1, n_actions).  Returns (B, n_actions) f32
    (softmax probabilities).  Weights are stored transposed vs PyTorch, i.e.
    y = x @ W + b  ==  x @ W_pt.T + b_pt."""
    B, n_obs = frame.shape
    n_hidden = w1.shape[1]
    n_actions = w2.shape[1]

    # --- Lane-dense output: pad the action dim up to a multiple of 128. ------
    n_pad = _round_up(max(n_actions, 128), 128)
    w2p = jnp.zeros((n_hidden, n_pad), w2.dtype).at[:, :n_actions].set(w2)
    b2p = jnp.full((1, n_pad), -1e30, dtype=b2.dtype).at[:, :n_actions].set(b2)

    # --- Batch tile: pad B to a multiple of the tile (sublane-aligned). ------
    tb = min(block_b, _round_up(B, 8))
    b_pad = _round_up(B, tb)
    if b_pad != B:
        frame = jnp.pad(frame, ((0, b_pad - B), (0, 0)))
    grid = (b_pad // tb,)

    out = pl.pallas_call(
        _action_model_kernel,
        out_shape=jax.ShapeDtypeStruct((b_pad, n_pad), jnp.float32),
        grid=grid,
        in_specs=[
            pl.BlockSpec((tb, n_obs), lambda i: (i, 0)),        # frame: tiled on batch
            pl.BlockSpec((n_obs, n_hidden), lambda i: (0, 0)),  # weights resident
            pl.BlockSpec((1, n_hidden), lambda i: (0, 0)),
            pl.BlockSpec((n_hidden, n_pad), lambda i: (0, 0)),
            pl.BlockSpec((1, n_pad), lambda i: (0, 0)),
        ],
        out_specs=pl.BlockSpec((tb, n_pad), lambda i: (i, 0)),
        compiler_params=pltpu.CompilerParams(
            dimension_semantics=("parallel",),                  # v7x: 2 TCs share batch
        ),
    )(frame, w1, b1, w2p, b2p)

    return out[:B, :n_actions]


def init_params(key, n_observations, n_hidden, n_actions):
    """Deterministic init mimicking torch.nn.Linear (uniform +-1/sqrt(fan_in))."""
    k1, k2, k3, k4 = jax.random.split(key, 4)
    bound1 = 1.0 / jnp.sqrt(n_observations)
    bound2 = 1.0 / jnp.sqrt(n_hidden)
    w1 = jax.random.uniform(k1, (n_observations, n_hidden), jnp.float32,
                            -bound1, bound1)
    b1 = jax.random.uniform(k2, (1, n_hidden), jnp.float32, -bound1, bound1)
    w2 = jax.random.uniform(k3, (n_hidden, n_actions), jnp.float32,
                            -bound2, bound2)
    b2 = jax.random.uniform(k4, (1, n_actions), jnp.float32, -bound2, bound2)
    return w1, b1, w2, b2


if __name__ == "__main__":
    # Small shapes consistent with the module's forward; batch intentionally not
    # a multiple of the tile so the padding path is exercised.
    batch = 200
    n_observations = 16
    n_hidden = 32
    n_actions = 8

    key = jax.random.PRNGKey(0)
    k_x, k_p = jax.random.split(key)
    frame = jax.random.normal(k_x, (batch, n_observations), jnp.float32)
    w1, b1, w2, b2 = init_params(k_p, n_observations, n_hidden, n_actions)

    fwd = jax.jit(functools.partial(action_model_forward, block_b=64))
    probs = jax.block_until_ready(fwd(frame, w1, b1, w2, b2))

    # Reference 1: pure-f32 math (the PyTorch module's exact semantics).
    z_f32 = jnp.tanh(frame @ w1 + b1)
    probs_f32 = jax.nn.softmax(z_f32 @ w2 + b2, axis=-1)

    # Reference 2: matched to the kernel's bf16-operand matmuls.
    z_bf = jnp.tanh(
        jnp.dot(frame.astype(jnp.bfloat16), w1.astype(jnp.bfloat16),
                preferred_element_type=jnp.float32) + b1)
    s_bf = jnp.dot(z_bf.astype(jnp.bfloat16), w2.astype(jnp.bfloat16),
                   preferred_element_type=jnp.float32) + b2
    probs_matched = jax.nn.softmax(s_bf, axis=-1)

    assert probs.shape == (batch, n_actions)
    assert jnp.allclose(probs, probs_matched, atol=5e-3), "mismatch vs matched ref"
    assert jnp.allclose(probs, probs_f32, atol=2e-2), "mismatch vs f32 ref"
    assert jnp.allclose(jnp.sum(probs, axis=-1), 1.0, atol=5e-3), "rows not normalized"

    print("KERNEL_OK")
</pallas_src>

<mosaic_0001>
module attributes {stable_mosaic.version = 11 : i64} {
  func.func @_action_model_kernel(%arg0: i32, %arg1: memref<64x16xf32, #tpu.memory_space<vmem>>, %arg2: memref<16x32xf32, #tpu.memory_space<vmem>>, %arg3: memref<1x32xf32, #tpu.memory_space<vmem>>, %arg4: memref<32x128xf32, #tpu.memory_space<vmem>>, %arg5: memref<1x128xf32, #tpu.memory_space<vmem>>, %arg6: memref<64x128xf32, #tpu.memory_space<vmem>>) attributes {dimension_semantics = [#tpu.dimension_semantics<parallel>], iteration_bounds = array<i64: 4>, scalar_prefetch = 0 : i64, scratch_operands = 0 : i64, tpu.core_type = #tpu.core_type<tc>, window_params = [{transform_indices = @transform_0, window_bounds = array<i64: 64, 16>}, {pipeline_mode = #tpu.pipeline_mode<synchronous>, transform_indices = @transform_1, window_bounds = array<i64: 16, 32>}, {pipeline_mode = #tpu.pipeline_mode<synchronous>, transform_indices = @transform_2, window_bounds = array<i64: 1, 32>}, {pipeline_mode = #tpu.pipeline_mode<synchronous>, transform_indices = @transform_3, window_bounds = array<i64: 32, 128>}, {pipeline_mode = #tpu.pipeline_mode<synchronous>, transform_indices = @transform_4, window_bounds = array<i64: 1, 128>}, {transform_indices = @transform_5, window_bounds = array<i64: 64, 128>}]} {
    %c0 = arith.constant 0 : index
    %c0_0 = arith.constant 0 : index
    %0 = vector.load %arg1[%c0, %c0_0] : memref<64x16xf32, #tpu.memory_space<vmem>>, vector<64x16xf32>
    %1 = arith.truncf %0 : vector<64x16xf32> to vector<64x16xbf16>
    %c0_1 = arith.constant 0 : index
    %c0_2 = arith.constant 0 : index
    %2 = vector.load %arg2[%c0_1, %c0_2] : memref<16x32xf32, #tpu.memory_space<vmem>>, vector<16x32xf32>
    %3 = arith.truncf %2 : vector<16x32xf32> to vector<16x32xbf16>
    %cst = arith.constant dense<0.000000e+00> : vector<64x32xf32>
    %4 = tpu.matmul %1, %3, %cst {dimension_numbers = #tpu.dot_dimension_numbers<[1], [0], [0], [1], [0, 0, 1, 1], [], []>} : vector<64x16xbf16>, vector<16x32xbf16>, vector<64x32xf32> -> vector<64x32xf32>
    %c0_3 = arith.constant 0 : index
    %c0_4 = arith.constant 0 : index
    %5 = vector.load %arg3[%c0_3, %c0_4] : memref<1x32xf32, #tpu.memory_space<vmem>>, vector<1x32xf32>
    %6 = vector.broadcast %5 : vector<1x32xf32> to vector<64x32xf32>
    %7 = arith.addf %4, %6 : vector<64x32xf32>
    %8 = math.tanh %7 : vector<64x32xf32>
    %c0_5 = arith.constant 0 : index
    %c0_6 = arith.constant 0 : index
    %9 = vector.load %arg4[%c0_5, %c0_6] : memref<32x128xf32, #tpu.memory_space<vmem>>, vector<32x128xf32>
    %10 = arith.truncf %9 : vector<32x128xf32> to vector<32x128xbf16>
    %11 = arith.truncf %8 : vector<64x32xf32> to vector<64x32xbf16>
    %cst_7 = arith.constant dense<0.000000e+00> : vector<64x128xf32>
    %12 = tpu.matmul %11, %10, %cst_7 {dimension_numbers = #tpu.dot_dimension_numbers<[1], [0], [0], [1], [0, 0, 1, 1], [], []>} : vector<64x32xbf16>, vector<32x128xbf16>, vector<64x128xf32> -> vector<64x128xf32>
    %c0_8 = arith.constant 0 : index
    %c0_9 = arith.constant 0 : index
    %13 = vector.load %arg5[%c0_8, %c0_9] : memref<1x128xf32, #tpu.memory_space<vmem>>, vector<1x128xf32>
    %14 = vector.broadcast %13 : vector<1x128xf32> to vector<64x128xf32>
    %15 = arith.addf %12, %14 : vector<64x128xf32>
    %cst_10 = arith.constant dense<0xFF800000> : vector<64xf32>
    %16 = vector.multi_reduction <maximumf>, %15, %cst_10 [1] : vector<64x128xf32> to vector<64xf32>
    %17 = vector.shape_cast %16 : vector<64xf32> to vector<64x1xf32>
    %18 = vector.broadcast %17 : vector<64x1xf32> to vector<64x128xf32>
    %19 = arith.subf %15, %18 : vector<64x128xf32>
    %20 = math.exp %19 : vector<64x128xf32>
    %cst_11 = arith.constant dense<0.000000e+00> : vector<64xf32>
    %21 = vector.multi_reduction <add>, %20, %cst_11 [1] : vector<64x128xf32> to vector<64xf32>
    %22 = vector.shape_cast %21 : vector<64xf32> to vector<64x1xf32>
    %23 = tpu.reciprocal %22 {approx = true} : vector<64x1xf32> -> vector<64x1xf32>
    %24 = vector.broadcast %23 : vector<64x1xf32> to vector<64x128xf32>
    %25 = arith.mulf %20, %24 : vector<64x128xf32>
    %c0_12 = arith.constant 0 : index
    %c0_13 = arith.constant 0 : index
    %26 = vector.load %arg6[%c0_12, %c0_13] : memref<64x128xf32, #tpu.memory_space<vmem>>, vector<64x128xf32>
    tpu.vector_store %arg6[%c0_12, %c0_13], %25 {strides = array<i32>} : memref<64x128xf32, #tpu.memory_space<vmem>>, vector<64x128xf32>,
    return
  }
  func.func @transform_0(%arg0: i32) -> (i32, i32) {
    %c0_i32 = arith.constant 0 : i32
    %c0_i32_0 = arith.constant 0 : i32
    return %arg0, %c0_i32 : i32, i32
  }
  func.func @transform_1(%arg0: i32) -> (i32, i32) {
    %c0_i32 = arith.constant 0 : i32
    %c0_i32_0 = arith.constant 0 : i32
    %c0_i32_1 = arith.constant 0 : i32
    return %c0_i32, %c0_i32_0 : i32, i32
  }
  func.func @transform_2(%arg0: i32) -> (i32, i32) {
    %c0_i32 = arith.constant 0 : i32
    %c0_i32_0 = arith.constant 0 : i32
    %c0_i32_1 = arith.constant 0 : i32
    return %c0_i32, %c0_i32_0 : i32, i32
  }
  func.func @transform_3(%arg0: i32) -> (i32, i32) {
    %c0_i32 = arith.constant 0 : i32
    %c0_i32_0 = arith.constant 0 : i32
    %c0_i32_1 = arith.constant 0 : i32
    return %c0_i32, %c0_i32_0 : i32, i32
  }
  func.func @transform_4(%arg0: i32) -> (i32, i32) {
    %c0_i32 = arith.constant 0 : i32
    %c0_i32_0 = arith.constant 0 : i32
    %c0_i32_1 = arith.constant 0 : i32
    return %c0_i32, %c0_i32_0 : i32, i32
  }
  func.func @transform_5(%arg0: i32) -> (i32, i32) {
    %c0_i32 = arith.constant 0 : i32
    %c0_i32_0 = arith.constant 0 : i32
    return %arg0, %c0_i32 : i32, i32
  }
}

</mosaic_0001>

<llo_original>
// kernel: action_model_forward.1
$region0: #{action_model_forward.1}
  #allocation0 [shape = 'u32[]', space=smem, size = 0x4, offset = 0x4, fixed_abs, tag = 'smem constant byte address 0x4 - core index']
  #allocation1 [shape = 'u32[144,128]{1,0:T(1,128)}', space=vmem, size = 0x12000, scoped, tag = 'internal scratch']
  %s0 = inlined_call_operand.vmem [shape: f32[256,16], index: 0, kind: input, shape index: {}]
  %s1 = inlined_call_operand.vmem [shape: f32[16,32], index: 1, kind: input, shape index: {}]
  %s2 = inlined_call_operand.vmem [shape: f32[1,32], index: 2, kind: input, shape index: {}]
  %s3 = inlined_call_operand.vmem [shape: f32[32,128], index: 3, kind: input, shape index: {}]
  %s4 = inlined_call_operand.vmem [shape: f32[1,128], index: 4, kind: input, shape index: {}]
  %s5 = inlined_call_operand.vmem [shape: f32[256,128], index: 5, kind: output, shape index: {}]
  %s6 = sld [smem:[#allocation0]]
  $region53: #{action_model_forward.1} parent=0
    _
  %s8 = ssub.s32 1, %s6
  %s9 = scalar_select 0, %s8, %s6
  loop: start=0, step=1, limit=6
  $region2: #{action_model_forward.1} parent=0 // loop_pre_header
    _
  $region3: #{action_model_forward.1} parent=0 // loop_header
    %s11 = sphi 0, %s15
    %p12 = scmp.ge.s32.totalorder %s11, 6
    %s21 = sphi 0, %s23
    %s24 = sphi 0, %s21
    %s25 = sphi 0, %s24
    %s41 = sphi 0, %s25
    %s45 = sphi 0, %s45
    %s47 = sphi 0, %s45
    %s48 = sphi 0, %s47
    %s62 = sphi 0, %s48
    %s66 = sphi 0, %s66
    %s68 = sphi 0, %s66
    %s69 = sphi 0, %s68
    %s83 = sphi 0, %s69
    %s87 = sphi 0, %s87
    %s89 = sphi 0, %s87
    %s90 = sphi 0, %s89
    %s104 = sphi 0, %s90
    %s108 = sphi 0, %s108
    %s110 = sphi 0, %s108
    %s111 = sphi 0, %s110
    %s125 = sphi 0, %s111
    %s131 = sphi 0, %s133
    %s134 = sphi 0, %s131
    %s135 = sphi 0, %s134
    %s151 = sphi 0, %s135
  $region4: #{action_model_forward.1} parent=0 // loop_header_branch
    %14 = sbr.rel (%p12) target = $region8
  $region5: #{action_model_forward.1} parent=0 // loop_body
    %s16 = ssub.s32 %s11, 1
    %s17 = ssub.s32 %s11, 2
    %s18 = sadd.s32 %s11, 1
    %s19 = ssub.s32 %s11, %s18
    %p20 = scmp.eq.s32.totalorder %s19, 0
    %s22 = sadd.s32 %s21, 1
    %s23 = scalar_select %p20, %s21, %s22
    %p26 = pneg %p20
    %p27 = scmp.eq.s32.totalorder %s11, 3
    %p28 = por %p26, %p27
    %p29 = scmp.ne.s32.totalorder %s21, %s24
    %p30 = scmp.eq.s32.totalorder %s11, 0
    %p31 = por %p29, %p30
    %p32 = scmp.ne.s32.totalorder %s21, %s24
    %p33 = scmp.eq.s32.totalorder %s16, 3
    %p34 = por %p32, %p33
    %p35 = scmp.ne.s32.totalorder %s24, %s25
    %p36 = scmp.eq.s32.totalorder %s16, 0
    %p37 = por %p35, %p36
    %p38 = scmp.ne.s32.totalorder %s24, %s25
    %p39 = scmp.eq.s32.totalorder %s17, 3
    %p40 = por %p38, %p39
    %p42 = scmp.ne.s32.totalorder %s25, %s41
    %p43 = scmp.eq.s32.totalorder %s17, 0
    %p44 = por %p42, %p43
    %s46 = sadd.s32 %s45, 1
    %p49 = scmp.eq.s32.totalorder %s11, 3
    %p50 = scmp.ne.s32.totalorder %s45, %s47
    %p51 = scmp.eq.s32.totalorder %s11, 0
    %p52 = por %p50, %p51
    %p53 = scmp.ne.s32.totalorder %s45, %s47
    %p54 = scmp.eq.s32.totalorder %s16, 3
    %p55 = por %p53, %p54
    %p56 = scmp.ne.s32.totalorder %s47, %s48
    %p57 = scmp.eq.s32.totalorder %s16, 0
    %p58 = por %p56, %p57
    %p59 = scmp.ne.s32.totalorder %s47, %s48
    %p60 = scmp.eq.s32.totalorder %s17, 3
    %p61 = por %p59, %p60
    %p63 = scmp.ne.s32.totalorder %s48, %s62
    %p64 = scmp.eq.s32.totalorder %s17, 0
    %p65 = por %p63, %p64
    %s67 = sadd.s32 %s66, 1
    %p70 = scmp.eq.s32.totalorder %s11, 3
    %p71 = scmp.ne.s32.totalorder %s66, %s68
    %p72 = scmp.eq.s32.totalorder %s11, 0
    %p73 = por %p71, %p72
    %p74 = scmp.ne.s32.totalorder %s66, %s68
    %p75 = scmp.eq.s32.totalorder %s16, 3
    %p76 = por %p74, %p75
    %p77 = scmp.ne.s32.totalorder %s68, %s69
    %p78 = scmp.eq.s32.totalorder %s16, 0
    %p79 = por %p77, %p78
    %p80 = scmp.ne.s32.totalorder %s68, %s69
    %p81 = scmp.eq.s32.totalorder %s17, 3
    %p82 = por %p80, %p81
    %p84 = scmp.ne.s32.totalorder %s69, %s83
    %p85 = scmp.eq.s32.totalorder %s17, 0
    %p86 = por %p84, %p85
    %s88 = sadd.s32 %s87, 1
    %p91 = scmp.eq.s32.totalorder %s11, 3
    %p92 = scmp.ne.s32.totalorder %s87, %s89
    %p93 = scmp.eq.s32.totalorder %s11, 0
    %p94 = por %p92, %p93
    %p95 = scmp.ne.s32.totalorder %s87, %s89
    %p96 = scmp.eq.s32.totalorder %s16, 3
    %p97 = por %p95, %p96
    %p98 = scmp.ne.s32.totalorder %s89, %s90
    %p99 = scmp.eq.s32.totalorder %s16, 0
    %p100 = por %p98, %p99
    %p101 = scmp.ne.s32.totalorder %s89, %s90
    %p102 = scmp.eq.s32.totalorder %s17, 3
    %p103 = por %p101, %p102
    %p105 = scmp.ne.s32.totalorder %s90, %s104
    %p106 = scmp.eq.s32.totalorder %s17, 0
    %p107 = por %p105, %p106
    %s109 = sadd.s32 %s108, 1
    %p112 = scmp.eq.s32.totalorder %s11, 3
    %p113 = scmp.ne.s32.totalorder %s108, %s110
    %p114 = scmp.eq.s32.totalorder %s11, 0
    %p115 = por %p113, %p114
    %p116 = scmp.ne.s32.totalorder %s108, %s110
    %p117 = scmp.eq.s32.totalorder %s16, 3
    %p118 = por %p116, %p117
    %p119 = scmp.ne.s32.totalorder %s110, %s111
    %p120 = scmp.eq.s32.totalorder %s16, 0
    %p121 = por %p119, %p120
    %p122 = scmp.ne.s32.totalorder %s110, %s111
    %p123 = scmp.eq.s32.totalorder %s17, 3
    %p124 = por %p122, %p123
    %p126 = scmp.ne.s32.totalorder %s111, %s125
    %p127 = scmp.eq.s32.totalorder %s17, 0
    %p128 = por %p126, %p127
    %s129 = ssub.s32 %s11, %s18
    %p130 = scmp.eq.s32.totalorder %s129, 0
    %s132 = sadd.s32 %s131, 1
    %s133 = scalar_select %p130, %s131, %s132
    %p136 = pneg %p130
    %p137 = scmp.eq.s32.totalorder %s11, 3
    %p138 = por %p136, %p137
    %p139 = scmp.ne.s32.totalorder %s131, %s134
    %p140 = scmp.eq.s32.totalorder %s11, 0
    %p141 = por %p139, %p140
    %p142 = scmp.ne.s32.totalorder %s131, %s134
    %p143 = scmp.eq.s32.totalorder %s16, 3
    %p144 = por %p142, %p143
    %p145 = scmp.ne.s32.totalorder %s134, %s135
    %p146 = scmp.eq.s32.totalorder %s16, 0
    %p147 = por %p145, %p146
    %p148 = scmp.ne.s32.totalorder %s134, %s135
    %p149 = scmp.eq.s32.totalorder %s17, 3
    %p150 = por %p148, %p149
    %p152 = scmp.ne.s32.totalorder %s135, %s151
    %p153 = scmp.eq.s32.totalorder %s17, 0
    %p154 = por %p152, %p153
    %p155 = scmp.le.s32.totalorder 1, %s11
    %p156 = scmp.lt.s32.totalorder %s11, 5
    %p157 = pnand %p155, %p156
    %p158 = pneg %p157
    // Predicated region
    $region9: #{action_model_forward.1} parent=5 // pred_check
      _
    $region10: #{action_model_forward.1} parent=5 // pred_check_branch
      %160 = sbr.rel (%p157) target = $region12
    $region11: #{action_model_forward.1} parent=5 // pred_region
      %s161 = ssub.s32 %s11, 1
      // Predicated region
      $region13: #{action_model_forward.1} parent=11 // pred_check
        %p162 = pneg %p58
      $region14: #{action_model_forward.1} parent=11 // pred_check_branch
        %164 = sbr.rel (%p162) target = $region16
      $region15: #{action_model_forward.1} parent=11 // pred_region
        _
      $region16: #{action_model_forward.1} parent=11 // pred_fallthru
        _
      // Predicated region
      $region17: #{action_model_forward.1} parent=11 // pred_check
        %p165 = pneg %p79
      $region18: #{action_model_forward.1} parent=11 // pred_check_branch
        %167 = sbr.rel (%p165) target = $region20
      $region19: #{action_model_forward.1} parent=11 // pred_region
        _
      $region20: #{action_model_forward.1} parent=11 // pred_fallthru
        _
      // Predicated region
      $region21: #{action_model_forward.1} parent=11 // pred_check
        %p168 = pneg %p100
      $region22: #{action_model_forward.1} parent=11 // pred_check_branch
        %170 = sbr.rel (%p168) target = $region24
      $region23: #{action_model_forward.1} parent=11 // pred_region
        _
      $region24: #{action_model_forward.1} parent=11 // pred_fallthru
        _
      // Predicated region
      $region25: #{action_model_forward.1} parent=11 // pred_check
        %p171 = pneg %p121
      $region26: #{action_model_forward.1} parent=11 // pred_check_branch
        %173 = sbr.rel (%p171) target = $region28
      $region27: #{action_model_forward.1} parent=11 // pred_region
        _
      $region28: #{action_model_forward.1} parent=11 // pred_fallthru
        _
    $region12: #{action_model_forward.1} parent=5 // pred_fallthru
      _
    %p174 = scmp.lt.s32.totalorder %s11, 4
    // Predicated region
    $region29: #{action_model_forward.1} parent=5 // pred_check
      %p175 = pneg %p174
    $region30: #{action_model_forward.1} parent=5 // pred_check_branch
      %177 = sbr.rel (%p175) target = $region32
    $region31: #{action_model_forward.1} parent=5 // pred_region
      // Predicated region
      $region33: #{action_model_forward.1} parent=31 // pred_check
        %p178 = pneg %p31
      $region34: #{action_model_forward.1} parent=31 // pred_check_branch
        %180 = sbr.rel (%p178) target = $region36
      $region35: #{action_model_forward.1} parent=31 // pred_region
        %s181 = smul.u32 8, %s11
        %p182 = scmp.lt.s32.totalorder %s181, 31
        %s183 = scalar_select %p182, %s181, 31
        %s184 = smul.addr %s183, 8
        %s185 = scalar_lea.vmem %s0, %s184
        %s186 = smul.u32 8, %s11
      $region36: #{action_model_forward.1} parent=31 // pred_fallthru
        _
    $region32: #{action_model_forward.1} parent=5 // pred_fallthru
      _
    %p187 = scmp.le.s32.totalorder 1, %s11
    %p188 = scmp.lt.s32.totalorder %s11, 5
    %p189 = pnand %p187, %p188
    %p190 = pneg %p189
    // Predicated region
    $region37: #{action_model_forward.1} parent=5 // pred_check
      _
    $region38: #{action_model_forward.1} parent=5 // pred_check_branch
      %192 = sbr.rel (%p189) target = $region40
    $region39: #{action_model_forward.1} parent=5 // pred_region
      %s193 = ssub.s32 %s11, 1
      %s194 = smul.u32 8, %s16
      %p195 = scmp.lt.s32.totalorder %s194, 31
      %s196 = scalar_select %p195, %s194, 31
      %s197 = smul.addr %s196, 8
      %s198 = scalar_lea.vmem %s0, %s197
      %p199 = pneg %p37
      %p200 = pneg %p34
      %p201 = pneg %p58
      %p202 = pneg %p55
      %p203 = pneg %p79
      %p204 = pneg %p76
      %p205 = pneg %p100
      %p206 = pneg %p97
      %p207 = pneg %p121
      %p208 = pneg %p118
      %p209 = pneg %p147
      %p210 = pneg %p144
      %s211 = smul.u32 8, %s16
      %p212 = scmp.lt.s32.totalorder %s211, 31
      %s213 = scalar_select %p212, %s211, 31
      %s214 = smul.addr %s213, 8
      %s215 = scalar_lea.vmem %s5, %s214
      %s216 = smul.u32 8, %s16
      %p217 = scmp.lt.s32.totalorder %s216, 31
      %s218 = scalar_select %p217, %s216, 31
      %s219 = smul.addr %s218, 8
      %s220 = scalar_lea.vmem %s0, %s219
      %s221 = smul.u32 8, %s16
      %s222 = smul.u32 8, %s16
      %p223 = scmp.lt.s32.totalorder %s222, 31
      %s224 = scalar_select %p223, %s222, 31
      %s225 = smul.addr %s224, 8
      %s226 = scalar_lea.vmem %s5, %s225
      %s227 = smul.u32 8, %s16
      %v229 = vld [vmem:[%s220] sm:$0xff]
      %v230 = vld [vmem:[%s220 + $0x8] sm:$0xff]
      %v231 = vld [vmem:[%s220 + $0x10] sm:$0xff]
      %v232 = vld [vmem:[%s220 + $0x18] sm:$0xff]
      %v233 = vld [vmem:[%s220 + $0x20] sm:$0xff]
      %v234 = vld [vmem:[%s220 + $0x28] sm:$0xff]
      %v235 = vld [vmem:[%s220 + $0x30] sm:$0xff]
      %v236 = vld [vmem:[%s220 + $0x38] sm:$0xff]
      %v237 = vpack.c.bf16 %v230, %v229
      %v238 = vpack.c.bf16 %v232, %v231
      %v239 = vpack.c.bf16 %v234, %v233
      %v240 = vpack.c.bf16 %v236, %v235
      %v241 = vld [vmem:[%s1] sm:$0xff]
      %v242 = vld [vmem:[%s1 + $0x8] sm:$0xff]
      %v243 = vpack.c.bf16 %v242, %v241
      %v244 = vld [vmem:[%s2] sm:$0x1]
      %v246 = vlaneseq
      %v247 = vshrl.u32 %v246, 7
      %v248 = vsub.s32 0, %v247
      %v249 = vrot.slane %v244, %v248
      %vm251 = vcmask 130048
      %v253 = vsel %vm251, %v237, 0
      %v256 = vsel %vm251, %v238, 0
      %v259 = vsel %vm251, %v239, 0
      %v262 = vsel %vm251, %v240, 0
      %264 = vmatprep.subr.bf16.mxu0 0
      %265 = vmatpush1.bf16.msra.mxu0 %v243
      %266 = vmatprep.subr.bf16.mxu0 0
      %267 = vmatpush1.bf16.msra.mxu0 0
      %268 = vmatprep.subr.bf16.mxu0 0
      %269 = vmatpush1.bf16.msra.mxu0 0
      %270 = vmatprep.subr.bf16.mxu0 0
      %271 = vmatpush1.bf16.msra.mxu0 0
      %272 = vmatprep.subr.bf16.mxu0 0
      %273 = vmatpush1.bf16.msra.mxu0 0
      %274 = vmatprep.subr.bf16.mxu0 0
      %275 = vmatpush1.bf16.msra.mxu0 0
      %276 = vmatprep.subr.bf16.mxu0 0
      %277 = vmatpush1.bf16.msra.mxu0 0
      %278 = vmatprep.subr.bf16.mxu0 0
      %279 = vmatpush1.bf16.msra.mxu0 0
      %280 = vmatprep.subr.bf16.mxu0 0
      %281 = vmatpush1.bf16.msra.mxu0 0
      %282 = vmatprep.subr.bf16.mxu0 0
      %283 = vmatpush1.bf16.msra.mxu0 0
      %284 = vmatprep.subr.bf16.mxu0 0
      %285 = vmatpush1.bf16.msra.mxu0 0
      %286 = vmatprep.subr.bf16.mxu0 0
      %287 = vmatpush1.bf16.msra.mxu0 0
      %288 = vmatprep.subr.bf16.mxu0 0
      %289 = vmatpush1.bf16.msra.mxu0 0
      %290 = vmatprep.subr.bf16.mxu0 0
      %291 = vmatpush1.bf16.msra.mxu0 0
      %292 = vmatprep.subr.bf16.mxu0 0
      %293 = vmatpush1.bf16.msra.mxu0 0
      %294 = vmatprep.subr.bf16.mxu0 0
      %295 = vmatpush1.bf16.msra.mxu0 0
      %296 = vmatprep.mubr.bf16.mxu0 0
      %297 = vmatmul.mubr.bf16.gmra.mrb[0].mxu0 %v253
      %v298 = vpop.f32.mrb[0].mxu0
      %v299 = vadd.f32 %v249, %v298
      %v300 = vpop.f32.mrb[0].mxu0
      %v301 = vpop.f32.mrb[0].mxu0
      %v302 = vadd.f32 %v249, %v301
      %v303 = vpop.f32.mrb[0].mxu0
      %304 = vmatprep.mubr.bf16.mxu0 0
      %305 = vmatmul.mubr.bf16.gmra.mrb[0].mxu0 %v256
      %v306 = vpop.f32.mrb[0].mxu0
      %v307 = vadd.f32 %v249, %v306
      %v308 = vpop.f32.mrb[0].mxu0
      %v309 = vpop.f32.mrb[0].mxu0
      %v310 = vadd.f32 %v249, %v309
      %v311 = vpop.f32.mrb[0].mxu0
      %312 = vmatprep.mubr.bf16.mxu0 0
      %313 = vmatmul.mubr.bf16.gmra.mrb[0].mxu0 %v259
      %v314 = vpop.f32.mrb[0].mxu0
      %v315 = vadd.f32 %v249, %v314
      %v316 = vpop.f32.mrb[0].mxu0
      %v317 = vpop.f32.mrb[0].mxu0
      %v318 = vadd.f32 %v249, %v317
      %v319 = vpop.f32.mrb[0].mxu0
      %320 = vmatprep.mubr.bf16.mxu0 0
      %321 = vmatmul.mubr.bf16.gmra.mrb[0].mxu0 %v262
      %v322 = vpop.f32.mrb[0].mxu0
      %v323 = vadd.f32 %v249, %v322
      %v324 = vpop.f32.mrb[0].mxu0
      %v325 = vpop.f32.mrb[0].mxu0
      %v326 = vadd.f32 %v249, %v325
      %v327 = vpop.f32.mrb[0].mxu0
      %328 = vdwg.mxu0
      %v329 = vtanh.pop %v299
      %v330 = vtanh.pop %v302
      %v331 = vtanh.pop %v307
      %v332 = vtanh.pop %v310
      %v333 = vtanh.pop %v315
      %v334 = vtanh.pop %v318
      %v335 = vtanh.pop %v323
      %v336 = vtanh.pop %v326
      %v337 = vld [vmem:[%s3] sm:$0xff]
      %v338 = vld [vmem:[%s3 + $0x8] sm:$0xff]
      %v339 = vld [vmem:[%s3 + $0x10] sm:$0xff]
      %v340 = vld [vmem:[%s3 + $0x18] sm:$0xff]
      %v341 = vpack.c.bf16 %v338, %v337
      %v342 = vpack.c.bf16 %v340, %v339
      %v343 = vpack.c.bf16 %v330, %v329
      %v344 = vpack.c.bf16 %v332, %v331
      %v345 = vpack.c.bf16 %v334, %v333
      %v346 = vpack.c.bf16 %v336, %v335
      %v347 = vld [vmem:[%s4] sm:$0x1]
      %v349 = vlaneseq
      %v350 = vshrl.u32 %v349, 7
      %v351 = vsub.s32 0, %v350
      %v352 = vrot.slane %v347, %v351
      %vm354 = vcmask 261120
      %v356 = vsel %vm354, %v343, 0
      %v359 = vsel %vm354, %v344, 0
      %v362 = vsel %vm354, %v345, 0
      %v365 = vsel %vm354, %v346, 0
      %367 = vmatprep.subr.bf16.mxu0 0
      %368 = vmatpush1.bf16.msra.mxu0 %v341
      %369 = vmatprep.subr.bf16.mxu0 0
      %370 = vmatpush1.bf16.msra.mxu0 %v342
      %371 = vmatprep.subr.bf16.mxu0 0
      %372 = vmatpush1.bf16.msra.mxu0 0
      %373 = vmatprep.subr.bf16.mxu0 0
      %374 = vmatpush1.bf16.msra.mxu0 0
      %375 = vmatprep.subr.bf16.mxu0 0
      %376 = vmatpush1.bf16.msra.mxu0 0
      %377 = vmatprep.subr.bf16.mxu0 0
      %378 = vmatpush1.bf16.msra.mxu0 0
      %379 = vmatprep.subr.bf16.mxu0 0
      %380 = vmatpush1.bf16.msra.mxu0 0
      %381 = vmatprep.subr.bf16.mxu0 0
      %382 = vmatpush1.bf16.msra.mxu0 0
      %383 = vmatprep.subr.bf16.mxu0 0
      %384 = vmatpush1.bf16.msra.mxu0 0
      %385 = vmatprep.subr.bf16.mxu0 0
      %386 = vmatpush1.bf16.msra.mxu0 0
      %387 = vmatprep.subr.bf16.mxu0 0
      %388 = vmatpush1.bf16.msra.mxu0 0
      %389 = vmatprep.subr.bf16.mxu0 0
      %390 = vmatpush1.bf16.msra.mxu0 0
      %391 = vmatprep.subr.bf16.mxu0 0
      %392 = vmatpush1.bf16.msra.mxu0 0
      %393 = vmatprep.subr.bf16.mxu0 0
      %394 = vmatpush1.bf16.msra.mxu0 0
      %395 = vmatprep.subr.bf16.mxu0 0
      %396 = vmatpush1.bf16.msra.mxu0 0
      %397 = vmatprep.subr.bf16.mxu0 0
      %398 = vmatpush1.bf16.msra.mxu0 0
      %399 = vmatprep.mubr.bf16.mxu0 0
      %400 = vmatmul.mubr.bf16.gmra.mrb[0].mxu0 %v356
      %v401 = vpop.f32.mrb[0].mxu0
      %v402 = vadd.f32 %v352, %v401
      %v403 = vpop.f32.mrb[0].mxu0
      %v404 = vpop.f32.mrb[0].mxu0
      %v405 = vadd.f32 %v352, %v404
      %v406 = vpop.f32.mrb[0].mxu0
      %407 = vmatprep.mubr.bf16.mxu0 0
      %408 = vmatmul.mubr.bf16.gmra.mrb[0].mxu0 %v359
      %v409 = vpop.f32.mrb[0].mxu0
      %v410 = vadd.f32 %v352, %v409
      %v411 = vpop.f32.mrb[0].mxu0
      %v412 = vpop.f32.mrb[0].mxu0
      %v413 = vadd.f32 %v352, %v412
      %v414 = vpop.f32.mrb[0].mxu0
      %415 = vmatprep.mubr.bf16.mxu0 0
      %416 = vmatmul.mubr.bf16.gmra.mrb[0].mxu0 %v362
      %v417 = vpop.f32.mrb[0].mxu0
      %v418 = vadd.f32 %v352, %v417
      %v419 = vpop.f32.mrb[0].mxu0
      %v420 = vpop.f32.mrb[0].mxu0
      %v421 = vadd.f32 %v352, %v420
      %v422 = vpop.f32.mrb[0].mxu0
      %423 = vmatprep.mubr.bf16.mxu0 0
      %424 = vmatmul.mubr.bf16.gmra.mrb[0].mxu0 %v365
      %v425 = vpop.f32.mrb[0].mxu0
      %v426 = vadd.f32 %v352, %v425
      %v427 = vpop.f32.mrb[0].mxu0
      %v428 = vpop.f32.mrb[0].mxu0
      %v429 = vadd.f32 %v352, %v428
      %v430 = vpop.f32.mrb[0].mxu0
      %431 = vdwg.mxu0
      %432 = vmax.xlane.f32.xlu0 %v402
      %v433 = vpop.xlane.xlu0 %432
      %434 = vmax.xlane.f32.xlu0 %v405
      %v435 = vpop.xlane.xlu0 %434
      %436 = vmax.xlane.f32.xlu0 %v410
      %v437 = vpop.xlane.xlu0 %436
      %438 = vmax.xlane.f32.xlu0 %v413
      %v439 = vpop.xlane.xlu0 %438
      %440 = vmax.xlane.f32.xlu0 %v418
      %v441 = vpop.xlane.xlu0 %440
      %442 = vmax.xlane.f32.xlu0 %v421
      %v443 = vpop.xlane.xlu0 %442
      %444 = vmax.xlane.f32.xlu0 %v426
      %v445 = vpop.xlane.xlu0 %444
      %446 = vmax.xlane.f32.xlu0 %v429
      %v447 = vpop.xlane.xlu0 %446
      %v448 = vsub.f32 %v402, %v433
      %v449 = vsub.f32 %v405, %v435
      %v450 = vsub.f32 %v410, %v437
      %v451 = vsub.f32 %v413, %v439
      %v452 = vsub.f32 %v418, %v441
      %v453 = vsub.f32 %v421, %v443
      %v454 = vsub.f32 %v426, %v445
      %v455 = vsub.f32 %v429, %v447
      %v456 = vmul.f32 %v448, 1.442695
      %v457 = vpow.pop %v456
      %v458 = vmul.f32 %v449, 1.442695
      %v459 = vpow.pop %v458
      %v460 = vmul.f32 %v450, 1.442695
      %v461 = vpow.pop %v460
      %v462 = vmul.f32 %v451, 1.442695
      %v463 = vpow.pop %v462
      %v464 = vmul.f32 %v452, 1.442695
      %v465 = vpow.pop %v464
      %v466 = vmul.f32 %v453, 1.442695
      %v467 = vpow.pop %v466
      %v468 = vmul.f32 %v454, 1.442695
      %v469 = vpow.pop %v468
      %v470 = vmul.f32 %v455, 1.442695
      %v471 = vpow.pop %v470
      %472 = vadd.xlane.f32.xlu0 %v457
      %v473 = vpop.xlane.xlu0 %472
      %474 = vadd.xlane.f32.xlu0 %v459
      %v475 = vpop.xlane.xlu0 %474
      %476 = vadd.xlane.f32.xlu0 %v461
      %v477 = vpop.xlane.xlu0 %476
      %478 = vadd.xlane.f32.xlu0 %v463
      %v479 = vpop.xlane.xlu0 %478
      %480 = vadd.xlane.f32.xlu0 %v465
      %v481 = vpop.xlane.xlu0 %480
      %482 = vadd.xlane.f32.xlu0 %v467
      %v483 = vpop.xlane.xlu0 %482
      %484 = vadd.xlane.f32.xlu0 %v469
      %v485 = vpop.xlane.xlu0 %484
      %486 = vadd.xlane.f32.xlu0 %v471
      %v487 = vpop.xlane.xlu0 %486
      %v488 = vrcp.pop %v473
      %v489 = vrcp.pop %v475
      %v490 = vrcp.pop %v477
      %v491 = vrcp.pop %v479
      %v492 = vrcp.pop %v481
      %v493 = vrcp.pop %v483
      %v494 = vrcp.pop %v485
      %v495 = vrcp.pop %v487
      %v496 = vmul.f32 %v457, %v488
      %v497 = vmul.f32 %v459, %v489
      %v498 = vmul.f32 %v461, %v490
      %v499 = vmul.f32 %v463, %v491
      %v500 = vmul.f32 %v465, %v492
      %v501 = vmul.f32 %v467, %v493
      %v502 = vmul.f32 %v469, %v494
      %v503 = vmul.f32 %v471, %v495
      %504 = vst [vmem:[%s226] sm:$0xff] %v496
      %505 = vst [vmem:[%s226 + $0x8] sm:$0xff] %v497
      %506 = vst [vmem:[%s226 + $0x10] sm:$0xff] %v498
      %507 = vst [vmem:[%s226 + $0x18] sm:$0xff] %v499
      %508 = vst [vmem:[%s226 + $0x20] sm:$0xff] %v500
      %509 = vst [vmem:[%s226 + $0x28] sm:$0xff] %v501
      %510 = vst [vmem:[%s226 + $0x30] sm:$0xff] %v502
      %511 = vst [vmem:[%s226 + $0x38] sm:$0xff] %v503
      %s512 = smul.u32 8, %s16
      %p513 = scmp.lt.s32.totalorder %s512, 31
      %s514 = scalar_select %p513, %s512, 31
      %s515 = smul.addr %s514, 8
      %s516 = scalar_lea.vmem %s5, %s515
      // Predicated region
      $region41: #{action_model_forward.1} parent=39 // pred_check
        %p517 = pneg %p144
      $region42: #{action_model_forward.1} parent=39 // pred_check_branch
        %519 = sbr.rel (%p517) target = $region44
      $region43: #{action_model_forward.1} parent=39 // pred_region
        %s520 = smul.u32 8, %s16
      $region44: #{action_model_forward.1} parent=39 // pred_fallthru
        _
    $region40: #{action_model_forward.1} parent=5 // pred_fallthru
      _
    %p521 = scmp.le.s32.totalorder 2, %s11
    // Predicated region
    $region45: #{action_model_forward.1} parent=5 // pred_check
      %p522 = pneg %p521
    $region46: #{action_model_forward.1} parent=5 // pred_check_branch
      %524 = sbr.rel (%p522) target = $region48
    $region47: #{action_model_forward.1} parent=5 // pred_region
      %s525 = ssub.s32 %s11, 2
      // Predicated region
      $region49: #{action_model_forward.1} parent=47 // pred_check
        %p526 = pneg %p150
      $region50: #{action_model_forward.1} parent=47 // pred_check_branch
        %528 = sbr.rel (%p526) target = $region52
      $region51: #{action_model_forward.1} parent=47 // pred_region
        %s529 = smul.u32 8, %s17
        %p530 = scmp.lt.s32.totalorder %s529, 31
        %s531 = scalar_select %p530, %s529, 31
        %s532 = smul.addr %s531, 8
        %s533 = scalar_lea.vmem %s5, %s532
      $region52: #{action_model_forward.1} parent=47 // pred_fallthru
        _
    $region48: #{action_model_forward.1} parent=5 // pred_fallthru
      _
  $region6: #{action_model_forward.1} parent=0 // loop_footer
    %s15 = sadd.s32 1, %s11
  $region7: #{action_model_forward.1} parent=0 // loop_footer_branch
    %10 = sbr.rel target = $region3
  $region8: #{action_model_forward.1} parent=0 // loop_exit
    _

</llo_original>
